<compile_context>
chip_gen: v7x
topology: tpu7x:2x2x1
jax: 0.10.0
libtpu: 0.0.40
codegen_flags: <defaults>
</compile_context>

<pallas_src>
import functools

import jax
import jax.numpy as jnp
from jax.experimental import pallas as pl
from jax.experimental.pallas import tpu as pltpu


def _copy_kernel(x_ref, o_ref):
    # Shuffle is expressed in the BlockSpecs; body is a bare tile copy.
    o_ref[...] = x_ref[...]


def _strided_shuffle_kernel(x_ref, o_ref, *, group_in, group_out):
    # Fallback for HW % 128 != 0: whole (C, HW) slab resident in VMEM.
    # One strided sublane read + one contiguous multi-row store per out-group.
    for i in range(group_out):
        o_ref[pl.ds(i * group_in, group_in), :] = x_ref[
            pl.ds(i, group_in, stride=group_out), :
        ]


def _vmem_capacity_bytes():
    try:
        return int(pltpu.get_tpu_info().vmem_capacity_bytes)
    except Exception:
        return 64 << 20  # conservative (v7x per-TC VMEM)


def _pick_hw_block(hw, group_in, dtype_bytes, vmem_cap):
    """Largest multiple-of-128 divisor of hw whose block fits the target size."""
    # ~8 MiB blocks on 128 MiB-VMEM chips (v5e/v6e), ~4 MiB on 64 MiB (v7x).
    target_bytes = (8 << 20) if vmem_cap >= (96 << 20) else (4 << 20)
    cap_elems = max(128, target_bytes // max(1, group_in * dtype_bytes))
    hw_blk = min(hw, (cap_elems // 128) * 128)
    while hw % hw_blk != 0:  # terminates at 128 (128 divides hw on this path)
        hw_blk -= 128
    return hw_blk


def channel_shuffle(x, group_in, group_out):
    """Pallas ChannelShuffle. x: (N, C, H, W) with C == group_in * group_out."""
    N, C, H, W = x.shape
    assert C == group_in * group_out, (
        "input tensor size must be equal to group_in * group_out"
    )
    # Identity permutations: skip the kernel (and the HBM round trip) entirely.
    if group_in == 1 or group_out == 1:
        return x

    HW = H * W
    dtype_bytes = jnp.dtype(x.dtype).itemsize
    vmem_cap = _vmem_capacity_bytes()
    bytes_accessed = 2 * N * C * HW * dtype_bytes

    if HW % 128 == 0:
        # --- main path: shuffle via BlockSpec addressing, body = bare copy ---
        hw_blk = _pick_hw_block(HW, group_in, dtype_bytes, vmem_cap)
        num_hw = HW // hw_blk
        block_bytes = group_in * hw_blk * dtype_bytes
        vmem_limit = int(min(vmem_cap // 2, max(32 << 20, 6 * block_bytes)))

        # Free reshape of contiguous NCHW: row j of the middle dim holds input
        # channels j*group_out .. j*group_out + group_out - 1 back to back.
        xf = x.reshape(N, group_in, group_out * HW)

        # Input tile: all group_in rows, lane window starting at i*HW + h*hw_blk.
        # (last two block dims: group_in == full dim, hw_blk multiple of 128)
        in_spec = pl.BlockSpec(
            (None, group_in, hw_blk),
            lambda n, i, h: (n, 0, i * num_hw + h),
        )
        # Output tile: (group_in, hw_blk) slab of out[n, i, :, :].
        out_spec = pl.BlockSpec(
            (None, None, group_in, hw_blk),
            lambda n, i, h: (n, i, 0, h),
        )

        out = pl.pallas_call(
            _copy_kernel,
            out_shape=jax.ShapeDtypeStruct(
                (N, group_out, group_in, HW), x.dtype
            ),
            grid=(N, group_out, num_hw),
            in_specs=[in_spec],
            out_specs=out_spec,
            compiler_params=pltpu.CompilerParams(
                dimension_semantics=("parallel", "parallel", "parallel"),
                vmem_limit_bytes=vmem_limit,
            ),
            cost_estimate=pl.CostEstimate(
                flops=0, transcendentals=0, bytes_accessed=bytes_accessed
            ),
        )(xf)
        # out[n, i, j, :] == x[n, i + j*group_out, :]  ->  contiguous reshape.
        return out.reshape(N, C, H, W)

    # --- fallback: HW not lane-aligned; full (C, HW) slab per batch element ---
    # TODO(synk): very large C*HW with non-128-aligned HW could exceed VMEM
    # here; would need partial lane blocks (pl.cdiv grid) to tile spatially.
    xf = x.reshape(N, C, HW)
    block_bytes = C * HW * dtype_bytes
    vmem_limit = int(min(vmem_cap // 2, max(32 << 20, 6 * block_bytes)))
    spec = pl.BlockSpec((None, C, HW), lambda n: (n, 0, 0))
    kernel = functools.partial(
        _strided_shuffle_kernel, group_in=group_in, group_out=group_out
    )
    out = pl.pallas_call(
        kernel,
        out_shape=jax.ShapeDtypeStruct((N, C, HW), x.dtype),
        grid=(N,),
        in_specs=[spec],
        out_specs=spec,
        compiler_params=pltpu.CompilerParams(
            dimension_semantics=("parallel",),
            vmem_limit_bytes=vmem_limit,
        ),
        cost_estimate=pl.CostEstimate(
            flops=0, transcendentals=0, bytes_accessed=bytes_accessed
        ),
    )(xf)
    return out.reshape(N, C, H, W)


def channel_shuffle_ref(x, group_in, group_out):
    # Pure-JAX reference mirroring the PyTorch forward exactly.
    return jnp.concatenate(
        [x[:, i::group_out] for i in range(group_out)], axis=1
    )


if __name__ == "__main__":
    # ChannelShuffle has no learnable parameters; only group_in/group_out config.
    group_in, group_out = 2, 2
    N, C, H, W = 2, group_in * group_out, 16, 16

    key = jax.random.PRNGKey(0)
    x = jax.random.normal(key, (N, C, H, W), dtype=jnp.float32)

    out = channel_shuffle(x, group_in, group_out)
    out = jax.block_until_ready(out)

    ref = channel_shuffle_ref(x, group_in, group_out)
    assert out.shape == ref.shape and out.dtype == ref.dtype
    assert jnp.array_equal(out, ref), "Pallas output mismatch vs reference"

    print("KERNEL_OK")
</pallas_src>

<mosaic_0001>
module attributes {stable_mosaic.version = 11 : i64} {
  func.func @_copy_kernel(%arg0: i32, %arg1: i32, %arg2: i32, %arg3: memref<1x2x256xf32, #tpu.memory_space<vmem>>, %arg4: memref<1x1x2x256xf32, #tpu.memory_space<vmem>>) attributes {dimension_semantics = [#tpu.dimension_semantics<parallel>, #tpu.dimension_semantics<parallel>, #tpu.dimension_semantics<parallel>], iteration_bounds = array<i64: 2, 2, 1>, scalar_prefetch = 0 : i64, scratch_operands = 0 : i64, tpu.core_type = #tpu.core_type<tc>, window_params = [{transform_indices = @transform_0, window_bounds = array<i64: 1, 2, 256>}, {transform_indices = @transform_1, window_bounds = array<i64: 1, 1, 2, 256>}]} {
    %c0 = arith.constant 0 : index
    %c0_0 = arith.constant 0 : index
    %c0_1 = arith.constant 0 : index
    %0 = vector.load %arg3[%c0, %c0_0, %c0_1] : memref<1x2x256xf32, #tpu.memory_space<vmem>>, vector<1x2x256xf32>
    %1 = vector.shape_cast %0 : vector<1x2x256xf32> to vector<2x256xf32>
    %c0_2 = arith.constant 0 : index
    %c0_3 = arith.constant 0 : index
    %c0_4 = arith.constant 0 : index
    %c0_5 = arith.constant 0 : index
    %2 = vector.load %arg4[%c0_2, %c0_3, %c0_4, %c0_5] : memref<1x1x2x256xf32, #tpu.memory_space<vmem>>, vector<1x1x2x256xf32>
    %3 = vector.shape_cast %2 : vector<1x1x2x256xf32> to vector<2x256xf32>
    %4 = vector.shape_cast %1 : vector<2x256xf32> to vector<1x1x2x256xf32>
    tpu.vector_store %arg4[%c0_2, %c0_3, %c0_4, %c0_5], %4 {strides = array<i32>} : memref<1x1x2x256xf32, #tpu.memory_space<vmem>>, vector<1x1x2x256xf32>,
    return
  }
  func.func @transform_0(%arg0: i32, %arg1: i32, %arg2: i32) -> (i32, i32, i32) {
    %c1_i32 = arith.constant 1 : i32
    %0 = arith.muli %arg1, %c1_i32 : i32
    %1 = arith.addi %0, %arg2 : i32
    %c0_i32 = arith.constant 0 : i32
    %c0_i32_0 = arith.constant 0 : i32
    return %arg0, %c0_i32, %1 : i32, i32, i32
  }
  func.func @transform_1(%arg0: i32, %arg1: i32, %arg2: i32) -> (i32, i32, i32, i32) {
    %c0_i32 = arith.constant 0 : i32
    %c0_i32_0 = arith.constant 0 : i32
    return %arg0, %arg1, %c0_i32, %arg2 : i32, i32, i32, i32
  }
}

</mosaic_0001>

<llo_original>
// kernel: tpu_custom_call.1
$region0: #{tpu_custom_call.1}
  #allocation0 [shape = 'u32[]', space=smem, size = 0x4, offset = 0x4, fixed_abs, tag = 'smem constant byte address 0x4 - core index']
  #allocation1 [shape = 'u32[144,128]{1,0:T(1,128)}', space=vmem, size = 0x12000, scoped, tag = 'internal scratch']
  %s0 = inlined_call_operand.hbm [shape: f32[2,2,512], index: 0, kind: input, shape index: {}]
  %s1 = inlined_call_operand.hbm [shape: f32[2,2,2,256], index: 1, kind: output, shape index: {}]
  %s2 = sld [smem:[#allocation0]]
  $region41: #{tpu_custom_call.1} parent=0
    _
  %s4 = ssub.s32 1, %s2
  %s5 = scalar_select 0, %s4, %s2
  $region1: #{tpu_custom_call.1} parent=0
    #allocation2 [shape = 'u8[4096]{0}', space=vmem, size = 0x1000, scoped, tag = 'input window, operand 0']
    #allocation3 [shape = 's32[2]{0}', space=sflag, size = 0x8, scoped, tag = 'scoped memory for tpu_custom_call.1']
    #allocation4 [shape = 's32[2]{0}', space=sflag, size = 0x8, scoped, tag = 'scoped memory for tpu_custom_call.1']
    #allocation5 [shape = 'u8[4096]{0}', space=vmem, size = 0x1000, scoped, tag = 'output window, operand 0']
    %6 = vsyncpa [#allocation3], 0
    %s7 = scalar_lea.sflag [#allocation3], 1
    %8 = vsyncpa %s7, 0
    %9 = vsyncpa [#allocation4], 0
    %s10 = scalar_lea.sflag [#allocation4], 1
    %11 = vsyncpa %s10, 0
    loop: start=0, step=1, limit=6
    $region2: #{tpu_custom_call.1} parent=1 // loop_pre_header
      _
    $region3: #{tpu_custom_call.1} parent=1 // loop_header
      %s13 = sphi 0, %s17
      %p14 = scmp.ge.s32.totalorder %s13, 6
      %s20 = sphi 0, %s39
      %s21 = sphi 0, %s35
      %s22 = sphi 0, %s31
      %s23 = sphi 0, %s20
      %s24 = sphi 0, %s21
      %s25 = sphi 0, %s22
      %s26 = sphi 0, %s23
      %s27 = sphi 0, %s24
      %s28 = sphi 0, %s25
      %s46 = sphi 0, %s48
      %s49 = sphi 0, %s46
      %s50 = sphi 0, %s49
      %s66 = sphi 0, %s50
      %s76 = sphi 0, %s78
      %s79 = sphi 0, %s76
      %s80 = sphi 0, %s79
      %s96 = sphi 0, %s80
    $region4: #{tpu_custom_call.1} parent=1 // loop_header_branch
      %16 = sbr.rel (%p14) target = $region8
    $region5: #{tpu_custom_call.1} parent=1 // loop_body
      %s18 = ssub.s32 %s13, 1
      %s19 = ssub.s32 %s13, 2
      %s29 = sadd.s32 1, %s22
      %p30 = scmp.ge.s32.totalorder %s29, 1
      %s31 = scalar_select %p30, 0, %s29
      %s32 = sadd.s32 1, %s21
      %s33 = scalar_select %p30, %s32, %s21
      %p34 = scmp.ge.s32.totalorder %s33, 2
      %s35 = scalar_select %p34, 0, %s33
      %s36 = sadd.s32 1, %s20
      %s37 = scalar_select %p34, %s36, %s20
      %p38 = scmp.ge.s32.totalorder %s37, 2
      %s39 = scalar_select %p38, 0, %s37
      %s40 = sadd.s32 %s21, %s22
      %s41 = sadd.s32 %s35, %s31
      %s42 = ssub.s32 %s20, %s39
      %s43 = ssub.s32 %s40, %s41
      %s44 = sor.u32 %s42, %s43
      %p45 = scmp.eq.s32.totalorder %s44, 0
      %s47 = sadd.s32 %s46, 1
      %s48 = scalar_select %p45, %s46, %s47
      %p51 = pneg %p45
      %p52 = scmp.eq.s32.totalorder %s13, 3
      %p53 = por %p51, %p52
      %p54 = scmp.ne.s32.totalorder %s46, %s49
      %p55 = scmp.eq.s32.totalorder %s13, 0
      %p56 = por %p54, %p55
      %p57 = scmp.ne.s32.totalorder %s46, %s49
      %p58 = scmp.eq.s32.totalorder %s18, 3
      %p59 = por %p57, %p58
      %p60 = scmp.ne.s32.totalorder %s49, %s50
      %p61 = scmp.eq.s32.totalorder %s18, 0
      %p62 = por %p60, %p61
      %p63 = scmp.ne.s32.totalorder %s49, %s50
      %p64 = scmp.eq.s32.totalorder %s19, 3
      %p65 = por %p63, %p64
      %p67 = scmp.ne.s32.totalorder %s50, %s66
      %p68 = scmp.eq.s32.totalorder %s19, 0
      %p69 = por %p67, %p68
      %s70 = ssub.s32 %s20, %s39
      %s71 = ssub.s32 %s21, %s35
      %s72 = sor.u32 %s70, %s71
      %s73 = ssub.s32 %s22, %s31
      %s74 = sor.u32 %s72, %s73
      %p75 = scmp.eq.s32.totalorder %s74, 0
      %s77 = sadd.s32 %s76, 1
      %s78 = scalar_select %p75, %s76, %s77
      %p81 = pneg %p75
      %p82 = scmp.eq.s32.totalorder %s13, 3
      %p83 = por %p81, %p82
      %p84 = scmp.ne.s32.totalorder %s76, %s79
      %p85 = scmp.eq.s32.totalorder %s13, 0
      %p86 = por %p84, %p85
      %p87 = scmp.ne.s32.totalorder %s76, %s79
      %p88 = scmp.eq.s32.totalorder %s18, 3
      %p89 = por %p87, %p88
      %p90 = scmp.ne.s32.totalorder %s79, %s80
      %p91 = scmp.eq.s32.totalorder %s18, 0
      %p92 = por %p90, %p91
      %p93 = scmp.ne.s32.totalorder %s79, %s80
      %p94 = scmp.eq.s32.totalorder %s19, 3
      %p95 = por %p93, %p94
      %p97 = scmp.ne.s32.totalorder %s80, %s96
      %p98 = scmp.eq.s32.totalorder %s19, 0
      %p99 = por %p97, %p98
      %p100 = scmp.le.s32.totalorder 1, %s13
      %p101 = scmp.lt.s32.totalorder %s13, 5
      %p102 = pnand %p100, %p101
      %p103 = pneg %p102
      // Predicated region
      $region9: #{tpu_custom_call.1} parent=5 // pred_check
        _
      $region10: #{tpu_custom_call.1} parent=5 // pred_check_branch
        %105 = sbr.rel (%p102) target = $region12
      $region11: #{tpu_custom_call.1} parent=5 // pred_region
        %s106 = ssub.s32 %s13, 1
      $region12: #{tpu_custom_call.1} parent=5 // pred_fallthru
        _
      %p107 = scmp.lt.s32.totalorder %s13, 4
      // Predicated region
      $region13: #{tpu_custom_call.1} parent=5 // pred_check
        %p108 = pneg %p107
      $region14: #{tpu_custom_call.1} parent=5 // pred_check_branch
        %110 = sbr.rel (%p108) target = $region16
      $region15: #{tpu_custom_call.1} parent=5 // pred_region
        // Predicated region
        $region17: #{tpu_custom_call.1} parent=15 // pred_check
          %p111 = pneg %p56
        $region18: #{tpu_custom_call.1} parent=15 // pred_check_branch
          %113 = sbr.rel (%p111) target = $region20
        $region19: #{tpu_custom_call.1} parent=15 // pred_region
          %s114 = sand.u32 %s46, 1
          %s115 = scalar_lea.sflag [#allocation3], %s114
          %s116 = sand.u32 %s46, 1
          %s117 = smul.addr %s116, 4
          %s118 = scalar_lea.vmem [#allocation2], %s117
          %s119 = sadd.s32 %s21, %s22
          %s120 = smul.u32 2, %s119
          %s122 = ssub.s32 64, 64
          %123 = vsyncadd %s115, %s122
          %s124 = smul.addr %s20, 4
          %s125 = sadd.s32 %s120, %s124
          %s126 = smul.addr %s125, 32
          %s127 = scalar_lea.hbm %s0, %s126
          %s129 = sshll.u32 %s118, 4
          %s130 = int_to_ptr.vmem [resolvable:$true] %s129
          %132 = dma.hbm_to_vmem [thread:$0]  %s127, 64, %s130, %s115
        $region20: #{tpu_custom_call.1} parent=15 // pred_fallthru
          _
      $region16: #{tpu_custom_call.1} parent=5 // pred_fallthru
        _
      %p133 = scmp.le.s32.totalorder 1, %s13
      %p134 = scmp.lt.s32.totalorder %s13, 5
      %p135 = pnand %p133, %p134
      %p136 = pneg %p135
      // Predicated region
      $region21: #{tpu_custom_call.1} parent=5 // pred_check
        _
      $region22: #{tpu_custom_call.1} parent=5 // pred_check_branch
        %138 = sbr.rel (%p135) target = $region24
      $region23: #{tpu_custom_call.1} parent=5 // pred_region
        %s139 = ssub.s32 %s13, 1
        %s140 = sand.u32 %s49, 1
        %s141 = scalar_lea.sflag [#allocation3], %s140
        %s142 = sand.u32 %s49, 1
        %s143 = smul.addr %s142, 4
        %s144 = scalar_lea.vmem [#allocation2], %s143
        // Predicated region
        $region25: #{tpu_custom_call.1} parent=23 // pred_check
          %p145 = pneg %p62
        $region26: #{tpu_custom_call.1} parent=23 // pred_check_branch
          %147 = sbr.rel (%p145) target = $region28
        $region27: #{tpu_custom_call.1} parent=23 // pred_region
          %148 = dma.done %s141, 64
        $region28: #{tpu_custom_call.1} parent=23 // pred_fallthru
          _
        %s149 = sand.u32 %s49, 1
        %s150 = scalar_lea.sflag [#allocation3], %s149
        %s151 = sand.u32 %s49, 1
        %s152 = smul.addr %s151, 4
        %s153 = scalar_lea.vmem [#allocation2], %s152
        %p154 = pneg %p62
        %p155 = pneg %p59
        %p156 = pneg %p92
        %p157 = pneg %p89
        %s158 = sand.u32 %s79, 1
        %s159 = scalar_lea.sflag [#allocation4], %s158
        %s160 = sand.u32 %s79, 1
        %s161 = smul.addr %s160, 4
        %s162 = scalar_lea.vmem [#allocation5], %s161
        %s163 = sadd.s32 %s24, %s25
        %s164 = smul.u32 2, %s163
        %s165 = smul.u32 2, %s25
        %v166 = vld [vmem:[%s144] sm:$0xf]
        %167 = vst [vmem:[%s162] sm:$0xf] %v166
        %s168 = sand.u32 %s79, 1
        %s169 = scalar_lea.sflag [#allocation4], %s168
        %s170 = sand.u32 %s79, 1
        %s171 = smul.addr %s170, 4
        %s172 = scalar_lea.vmem [#allocation5], %s171
        // Predicated region
        $region29: #{tpu_custom_call.1} parent=23 // pred_check
          %p173 = pneg %p89
        $region30: #{tpu_custom_call.1} parent=23 // pred_check_branch
          %175 = sbr.rel (%p173) target = $region32
        $region31: #{tpu_custom_call.1} parent=23 // pred_region
          %s176 = smul.u32 2, %s25
          %s178 = ssub.s32 64, 64
          %179 = vsyncadd %s169, %s178
          %s180 = smul.addr %s24, 2
          %s181 = sadd.s32 %s176, %s180
          %s182 = smul.addr %s23, 4
          %s183 = sadd.s32 %s181, %s182
          %s184 = smul.addr %s183, 32
          %s185 = scalar_lea.hbm %s1, %s184
          %s187 = sshll.u32 %s172, 4
          %s188 = int_to_ptr.vmem [resolvable:$true] %s187
          %190 = dma.vmem_to_hbm [thread:$0]  %s188, 64, %s185, %s169
        $region32: #{tpu_custom_call.1} parent=23 // pred_fallthru
          _
      $region24: #{tpu_custom_call.1} parent=5 // pred_fallthru
        _
      %p191 = scmp.le.s32.totalorder 2, %s13
      // Predicated region
      $region33: #{tpu_custom_call.1} parent=5 // pred_check
        %p192 = pneg %p191
      $region34: #{tpu_custom_call.1} parent=5 // pred_check_branch
        %194 = sbr.rel (%p192) target = $region36
      $region35: #{tpu_custom_call.1} parent=5 // pred_region
        %s195 = ssub.s32 %s13, 2
        // Predicated region
        $region37: #{tpu_custom_call.1} parent=35 // pred_check
          %p196 = pneg %p95
        $region38: #{tpu_custom_call.1} parent=35 // pred_check_branch
          %198 = sbr.rel (%p196) target = $region40
        $region39: #{tpu_custom_call.1} parent=35 // pred_region
          %s199 = sand.u32 %s80, 1
          %s200 = scalar_lea.sflag [#allocation4], %s199
          %s201 = sand.u32 %s80, 1
          %s202 = smul.addr %s201, 4
          %s203 = scalar_lea.vmem [#allocation5], %s202
          %204 = dma.done %s200, 64
        $region40: #{tpu_custom_call.1} parent=35 // pred_fallthru
          _
      $region36: #{tpu_custom_call.1} parent=5 // pred_fallthru
        _
    $region6: #{tpu_custom_call.1} parent=1 // loop_footer
      %s17 = sadd.s32 1, %s13
    $region7: #{tpu_custom_call.1} parent=1 // loop_footer_branch
      %12 = sbr.rel target = $region3
    $region8: #{tpu_custom_call.1} parent=1 // loop_exit
      _
    %205 = vsyncpa [#allocation3], 1
    %s206 = scalar_lea.sflag [#allocation3], 1
    %207 = vsyncpa %s206, 1
    %208 = vsyncpa [#allocation4], 1
    %s209 = scalar_lea.sflag [#allocation4], 1
    %210 = vsyncpa %s209, 1

</llo_original>
